<compile_context>
chip_gen: v6e
topology: v6e:2x2x1
jax: 0.10.0
libtpu: 0.0.40
codegen_flags: <defaults>
</compile_context>

<pallas_src>
import functools

import jax
import jax.numpy as jnp
from jax.experimental import pallas as pl
from jax.experimental.pallas import tpu as pltpu


def _vmem_gather_kernel(idx_ref, table_ref, out_ref, *, tn, n):
    """Fast path: whole table VMEM-resident; gather TN rows per grid step.

    idx_ref:   [N] int32 in SMEM (scalar prefetch).
    table_ref: [V, D] full table (single block, constant index_map -> one DMA).
    out_ref:   [TN, D] output tile for this grid step.
    """
    base = pl.program_id(0) * tn
    for j in range(tn):  # static unroll; tn is small (8..32)
        r = jnp.minimum(base + j, n - 1)          # clamp tail rows of last block
        row = idx_ref[r]                          # scalar read from SMEM
        out_ref[pl.ds(j, 1), :] = table_ref[pl.ds(row, 1), :]


def _dma_gather_kernel(idx_ref, table_hbm, out_ref, rowbuf, sem, *, tn, n):
    """Large-table path: per-step TN row DMAs from HBM, double-buffered (P4).

    table_hbm: [V, D] raw HBM ref (memory_space=pl.ANY).
    rowbuf:    VMEM scratch (2, TN, D).
    sem:       DMA semaphores (2, TN).
    """
    step = pl.program_id(0)
    n_steps = pl.num_programs(0)
    slot = jax.lax.rem(step, 2)
    nxt = 1 - slot

    def issue(s, buf_slot):
        for j in range(tn):
            r = jnp.minimum(s * tn + j, n - 1)
            row = idx_ref[r]
            pltpu.make_async_copy(
                table_hbm.at[pl.ds(row, 1), :],
                rowbuf.at[buf_slot, pl.ds(j, 1), :],
                sem.at[buf_slot, j],
            ).start()

    # Prime the first slot on step 0.
    @pl.when(step == 0)
    def _():
        issue(0, slot)

    # Prefetch the next step's rows into the other slot.
    @pl.when(step + 1 < n_steps)
    def _():
        issue(step + 1, nxt)

    # Wait for this step's rows, then emit the (TN, D) output tile.
    for j in range(tn):
        pltpu.make_async_copy(
            table_hbm.at[pl.ds(0, 1), :],
            rowbuf.at[slot, pl.ds(j, 1), :],
            sem.at[slot, j],
        ).wait()
    out_ref[...] = rowbuf[slot]


def speaker_embedding(speaker_indices, embedding_table, *, force_dma_path=False):
    """speaker_indices: int [N]; embedding_table: [V, D] -> [N, D] gather."""
    n = int(speaker_indices.shape[0])
    v, d = embedding_table.shape
    dtype = embedding_table.dtype
    itemsize = jnp.dtype(dtype).itemsize

    # torch.nn.Embedding raises on OOB ids; clamp instead of an unchecked
    # data-dependent OOB read.  (Host-side assert would be the strict option.)
    idx = jnp.clip(speaker_indices.astype(jnp.int32), 0, v - 1)

    # Row-block size: at least the minimum sublane tile for the dtype
    # (8 f32 / 16 bf16 / 32 int8), target >= 32 rows to amortize per-step
    # overhead, but keep >= 2 grid steps when possible so both v7x TCs get work.
    sublane = max(8, 32 // itemsize)
    tn_target = max(sublane, 32)
    half = -(-((n + 1) // 2) // sublane) * sublane
    tn = max(sublane, min(tn_target, half))
    grid = (pl.cdiv(n, tn),)

    table_bytes = v * d * itemsize
    out_block_bytes = tn * d * itemsize
    use_vmem_table = (not force_dma_path) and table_bytes <= 12 * 1024 * 1024

    cost = pl.CostEstimate(
        flops=0,
        transcendentals=0,
        bytes_accessed=(table_bytes if use_vmem_table else n * d * itemsize)
        + n * d * itemsize
        + n * 4,
    )

    if use_vmem_table:
        kernel = functools.partial(_vmem_gather_kernel, tn=tn, n=n)
        grid_spec = pltpu.PrefetchScalarGridSpec(
            num_scalar_prefetch=1,  # `idx` lands in SMEM
            grid=grid,
            in_specs=[
                # Full table as a single block; constant index_map -> fetched once.
                pl.BlockSpec((v, d), lambda i, idx_ref: (0, 0)),
            ],
            out_specs=pl.BlockSpec((tn, d), lambda i, idx_ref: (i, 0)),
        )
        dims = ("parallel",)
        vmem_need = table_bytes + 4 * out_block_bytes + (2 << 20)
    else:
        kernel = functools.partial(_dma_gather_kernel, tn=tn, n=n)
        grid_spec = pltpu.PrefetchScalarGridSpec(
            num_scalar_prefetch=1,
            grid=grid,
            in_specs=[pl.BlockSpec(memory_space=pl.ANY)],  # table stays in HBM
            out_specs=pl.BlockSpec((tn, d), lambda i, idx_ref: (i, 0)),
            scratch_shapes=[
                pltpu.VMEM((2, tn, d), dtype),
                pltpu.SemaphoreType.DMA((2, tn)),
            ],
        )
        dims = ("arbitrary",)  # double-buffer scratch carries state across steps
        vmem_need = 2 * tn * d * itemsize + 4 * out_block_bytes + (2 << 20)

    vmem_limit = int(min(48 << 20, max(16 << 20, vmem_need)))

    out = pl.pallas_call(
        kernel,
        out_shape=jax.ShapeDtypeStruct((n, d), dtype),
        grid_spec=grid_spec,
        compiler_params=pltpu.CompilerParams(
            dimension_semantics=dims,
            vmem_limit_bytes=vmem_limit,
        ),
        cost_estimate=cost,
    )(idx, embedding_table)
    return out


if __name__ == "__main__":
    key = jax.random.PRNGKey(0)
    k_table, k_idx = jax.random.split(key)

    num_speakers = 8        # nn.Embedding(num_speakers, embedding_dim)
    embedding_dim = 128
    n = 16                  # number of speaker ids in the batch

    # nn.Embedding default init: weight ~ N(0, 1)
    embedding_table = jax.random.normal(
        k_table, (num_speakers, embedding_dim), dtype=jnp.float32
    )
    speaker_ids = jax.random.randint(k_idx, (n,), 0, num_speakers, dtype=jnp.int32)
    ref = jnp.take(embedding_table, speaker_ids, axis=0)

    # 1) VMEM-resident-table fast path.
    out = jax.block_until_ready(speaker_embedding(speaker_ids, embedding_table))
    assert out.shape == (n, embedding_dim) and out.dtype == embedding_table.dtype
    assert jnp.array_equal(out, ref), "fast path mismatch vs reference gather"

    # 2) Fast path with a tail block (N not a multiple of TN).
    n2 = 13
    ids2 = speaker_ids[:n2]
    out2 = jax.block_until_ready(speaker_embedding(ids2, embedding_table))
    assert jnp.array_equal(out2, jnp.take(embedding_table, ids2, axis=0)), (
        "tail-block mismatch vs reference gather"
    )

    # 3) HBM DMA-gather path (forced; used automatically for large tables).
    out3 = jax.block_until_ready(
        speaker_embedding(speaker_ids, embedding_table, force_dma_path=True)
    )
    assert jnp.array_equal(out3, ref), "DMA-gather path mismatch vs reference gather"

    print("KERNEL_OK")
</pallas_src>

<mosaic_0001>
module attributes {stable_mosaic.version = 11 : i64} {
  func.func @_vmem_gather_kernel(%arg0: i32, %arg1: memref<16xi32, #tpu.memory_space<smem>>, %arg2: memref<8x128xf32, #tpu.memory_space<vmem>>, %arg3: memref<8x128xf32, #tpu.memory_space<vmem>>) attributes {dimension_semantics = [#tpu.dimension_semantics<parallel>], iteration_bounds = array<i64: 2>, scalar_prefetch = 1 : i64, scratch_operands = 0 : i64, tpu.core_type = #tpu.core_type<tc>, window_params = [{pipeline_mode = #tpu.pipeline_mode<synchronous>, transform_indices = @transform_0, window_bounds = array<i64: 8, 128>}, {transform_indices = @transform_1, window_bounds = array<i64: 8, 128>}]} {
    %c8_i32 = arith.constant 8 : i32
    %0 = arith.muli %arg0, %c8_i32 : i32
    %c0_i32 = arith.constant 0 : i32
    %1 = arith.addi %0, %c0_i32 : i32
    %c15_i32 = arith.constant 15 : i32
    %2 = arith.minsi %1, %c15_i32 : i32
    %3 = arith.index_cast %2 : i32 to index
    %4 = memref.load %arg1[%3] : memref<16xi32, #tpu.memory_space<smem>>
    %5 = arith.index_cast %4 : i32 to index
    %c0 = arith.constant 0 : index
    %6 = vector.load %arg2[%5, %c0] : memref<8x128xf32, #tpu.memory_space<vmem>>, vector<1x128xf32>
    %c0_0 = arith.constant 0 : index
    %c0_1 = arith.constant 0 : index
    %7 = vector.load %arg3[%c0_0, %c0_1] : memref<8x128xf32, #tpu.memory_space<vmem>>, vector<1x128xf32>
    tpu.vector_store %arg3[%c0_0, %c0_1], %6 {strides = array<i32>} : memref<8x128xf32, #tpu.memory_space<vmem>>, vector<1x128xf32>,
    %c1_i32 = arith.constant 1 : i32
    %8 = arith.addi %0, %c1_i32 : i32
    %c15_i32_2 = arith.constant 15 : i32
    %9 = arith.minsi %8, %c15_i32_2 : i32
    %10 = arith.index_cast %9 : i32 to index
    %11 = memref.load %arg1[%10] : memref<16xi32, #tpu.memory_space<smem>>
    %12 = arith.index_cast %11 : i32 to index
    %c0_3 = arith.constant 0 : index
    %13 = vector.load %arg2[%12, %c0_3] : memref<8x128xf32, #tpu.memory_space<vmem>>, vector<1x128xf32>
    %c1 = arith.constant 1 : index
    %c0_4 = arith.constant 0 : index
    %14 = vector.load %arg3[%c1, %c0_4] : memref<8x128xf32, #tpu.memory_space<vmem>>, vector<1x128xf32>
    tpu.vector_store %arg3[%c1, %c0_4], %13 {strides = array<i32>} : memref<8x128xf32, #tpu.memory_space<vmem>>, vector<1x128xf32>,
    %c2_i32 = arith.constant 2 : i32
    %15 = arith.addi %0, %c2_i32 : i32
    %c15_i32_5 = arith.constant 15 : i32
    %16 = arith.minsi %15, %c15_i32_5 : i32
    %17 = arith.index_cast %16 : i32 to index
    %18 = memref.load %arg1[%17] : memref<16xi32, #tpu.memory_space<smem>>
    %19 = arith.index_cast %18 : i32 to index
    %c0_6 = arith.constant 0 : index
    %20 = vector.load %arg2[%19, %c0_6] : memref<8x128xf32, #tpu.memory_space<vmem>>, vector<1x128xf32>
    %c2 = arith.constant 2 : index
    %c0_7 = arith.constant 0 : index
    %21 = vector.load %arg3[%c2, %c0_7] : memref<8x128xf32, #tpu.memory_space<vmem>>, vector<1x128xf32>
    tpu.vector_store %arg3[%c2, %c0_7], %20 {strides = array<i32>} : memref<8x128xf32, #tpu.memory_space<vmem>>, vector<1x128xf32>,
    %c3_i32 = arith.constant 3 : i32
    %22 = arith.addi %0, %c3_i32 : i32
    %c15_i32_8 = arith.constant 15 : i32
    %23 = arith.minsi %22, %c15_i32_8 : i32
    %24 = arith.index_cast %23 : i32 to index
    %25 = memref.load %arg1[%24] : memref<16xi32, #tpu.memory_space<smem>>
    %26 = arith.index_cast %25 : i32 to index
    %c0_9 = arith.constant 0 : index
    %27 = vector.load %arg2[%26, %c0_9] : memref<8x128xf32, #tpu.memory_space<vmem>>, vector<1x128xf32>
    %c3 = arith.constant 3 : index
    %c0_10 = arith.constant 0 : index
    %28 = vector.load %arg3[%c3, %c0_10] : memref<8x128xf32, #tpu.memory_space<vmem>>, vector<1x128xf32>
    tpu.vector_store %arg3[%c3, %c0_10], %27 {strides = array<i32>} : memref<8x128xf32, #tpu.memory_space<vmem>>, vector<1x128xf32>,
    %c4_i32 = arith.constant 4 : i32
    %29 = arith.addi %0, %c4_i32 : i32
    %c15_i32_11 = arith.constant 15 : i32
    %30 = arith.minsi %29, %c15_i32_11 : i32
    %31 = arith.index_cast %30 : i32 to index
    %32 = memref.load %arg1[%31] : memref<16xi32, #tpu.memory_space<smem>>
    %33 = arith.index_cast %32 : i32 to index
    %c0_12 = arith.constant 0 : index
    %34 = vector.load %arg2[%33, %c0_12] : memref<8x128xf32, #tpu.memory_space<vmem>>, vector<1x128xf32>
    %c4 = arith.constant 4 : index
    %c0_13 = arith.constant 0 : index
    %35 = vector.load %arg3[%c4, %c0_13] : memref<8x128xf32, #tpu.memory_space<vmem>>, vector<1x128xf32>
    tpu.vector_store %arg3[%c4, %c0_13], %34 {strides = array<i32>} : memref<8x128xf32, #tpu.memory_space<vmem>>, vector<1x128xf32>,
    %c5_i32 = arith.constant 5 : i32
    %36 = arith.addi %0, %c5_i32 : i32
    %c15_i32_14 = arith.constant 15 : i32
    %37 = arith.minsi %36, %c15_i32_14 : i32
    %38 = arith.index_cast %37 : i32 to index
    %39 = memref.load %arg1[%38] : memref<16xi32, #tpu.memory_space<smem>>
    %40 = arith.index_cast %39 : i32 to index
    %c0_15 = arith.constant 0 : index
    %41 = vector.load %arg2[%40, %c0_15] : memref<8x128xf32, #tpu.memory_space<vmem>>, vector<1x128xf32>
    %c5 = arith.constant 5 : index
    %c0_16 = arith.constant 0 : index
    %42 = vector.load %arg3[%c5, %c0_16] : memref<8x128xf32, #tpu.memory_space<vmem>>, vector<1x128xf32>
    tpu.vector_store %arg3[%c5, %c0_16], %41 {strides = array<i32>} : memref<8x128xf32, #tpu.memory_space<vmem>>, vector<1x128xf32>,
    %c6_i32 = arith.constant 6 : i32
    %43 = arith.addi %0, %c6_i32 : i32
    %c15_i32_17 = arith.constant 15 : i32
    %44 = arith.minsi %43, %c15_i32_17 : i32
    %45 = arith.index_cast %44 : i32 to index
    %46 = memref.load %arg1[%45] : memref<16xi32, #tpu.memory_space<smem>>
    %47 = arith.index_cast %46 : i32 to index
    %c0_18 = arith.constant 0 : index
    %48 = vector.load %arg2[%47, %c0_18] : memref<8x128xf32, #tpu.memory_space<vmem>>, vector<1x128xf32>
    %c6 = arith.constant 6 : index
    %c0_19 = arith.constant 0 : index
    %49 = vector.load %arg3[%c6, %c0_19] : memref<8x128xf32, #tpu.memory_space<vmem>>, vector<1x128xf32>
    tpu.vector_store %arg3[%c6, %c0_19], %48 {strides = array<i32>} : memref<8x128xf32, #tpu.memory_space<vmem>>, vector<1x128xf32>,
    %c7_i32 = arith.constant 7 : i32
    %50 = arith.addi %0, %c7_i32 : i32
    %c15_i32_20 = arith.constant 15 : i32
    %51 = arith.minsi %50, %c15_i32_20 : i32
    %52 = arith.index_cast %51 : i32 to index
    %53 = memref.load %arg1[%52] : memref<16xi32, #tpu.memory_space<smem>>
    %54 = arith.index_cast %53 : i32 to index
    %c0_21 = arith.constant 0 : index
    %55 = vector.load %arg2[%54, %c0_21] : memref<8x128xf32, #tpu.memory_space<vmem>>, vector<1x128xf32>
    %c7 = arith.constant 7 : index
    %c0_22 = arith.constant 0 : index
    %56 = vector.load %arg3[%c7, %c0_22] : memref<8x128xf32, #tpu.memory_space<vmem>>, vector<1x128xf32>
    tpu.vector_store %arg3[%c7, %c0_22], %55 {strides = array<i32>} : memref<8x128xf32, #tpu.memory_space<vmem>>, vector<1x128xf32>,
    return
  }
  func.func @transform_0(%arg0: i32, %arg1: memref<16xi32, #tpu.memory_space<smem>>) -> (i32, i32) {
    %c0_i32 = arith.constant 0 : i32
    %c0_i32_0 = arith.constant 0 : i32
    %c0_i32_1 = arith.constant 0 : i32
    return %c0_i32, %c0_i32_0 : i32, i32
  }
  func.func @transform_1(%arg0: i32, %arg1: memref<16xi32, #tpu.memory_space<smem>>) -> (i32, i32) {
    %c0_i32 = arith.constant 0 : i32
    %c0_i32_0 = arith.constant 0 : i32
    return %arg0, %c0_i32 : i32, i32
  }
}

</mosaic_0001>

<llo_original>
// kernel: tpu_custom_call.1
$region0: #{tpu_custom_call.1}
  #allocation0 [shape = 'u32[]', space=smem, size = 0x4, offset = 0x4, fixed_abs, tag = 'smem constant byte address 0x4 - core index']
  #allocation1 [shape = 'u32[144,128]{1,0:T(1,128)}', space=vmem, size = 0x12000, scoped, tag = 'internal scratch']
  #allocation2 [shape = 's32[1]{0}', space=sflag, size = 0x4, scoped, tag = 'scoped memory for tpu_custom_call.1']
  #allocation3 [shape = 'u8[512]{0}', space=smem, size = 0x200, scoped, tag = 'prefetched SMEM operand 0']
  %s0 = inlined_call_operand.hbm [shape: s32[16], index: 0, kind: input, shape index: {}]
  %s1 = inlined_call_operand.hbm [shape: f32[8,128], index: 1, kind: input, shape index: {}]
  %s2 = inlined_call_operand.hbm [shape: f32[16,128], index: 2, kind: output, shape index: {}]
  %s3 = sld [smem:[#allocation0]]
  $region41: #{tpu_custom_call.1} parent=0
    _
  %s5 = ssub.s32 1, %s3
  %s6 = scalar_select 0, %s5, %s3
  %8 = dma.hbm_to_smem %s0, 16, [#allocation3], [#allocation2]
  %9 = dma.done [#allocation2], 16
  %10 = sfence
  $region1: #{tpu_custom_call.1} parent=0
    #allocation4 [shape = 'u8[4096]{0}', space=vmem, size = 0x1000, scoped, tag = 'input window, operand 1, single buffered']
    #allocation5 [shape = 's32[2]{0}', space=sflag, size = 0x8, scoped, tag = 'scoped memory for tpu_custom_call.1']
    #allocation6 [shape = 's32[2]{0}', space=sflag, size = 0x8, scoped, tag = 'scoped memory for tpu_custom_call.1']
    #allocation7 [shape = 'u8[8192]{0}', space=vmem, size = 0x2000, scoped, tag = 'output window, operand 0']
    %11 = vsyncpa [#allocation5], 0
    %12 = vsyncpa [#allocation6], 0
    %s13 = scalar_lea.sflag [#allocation6], 1
    %14 = vsyncpa %s13, 0
    loop: start=0, step=1, limit=4
    $region2: #{tpu_custom_call.1} parent=1 // loop_pre_header
      _
    $region3: #{tpu_custom_call.1} parent=1 // loop_header
      %s16 = sphi 0, %s20
      %p17 = scmp.ge.s32.totalorder %s16, 4
      %s24 = sphi 0, %s24
      %s26 = sphi 0, %s24
      %s27 = sphi 0, %s26
      %s41 = sphi 0, %s27
      %s47 = sphi 0, %s49
      %s50 = sphi 0, %s47
      %s51 = sphi 0, %s50
      %s67 = sphi 0, %s51
    $region4: #{tpu_custom_call.1} parent=1 // loop_header_branch
      %19 = sbr.rel (%p17) target = $region8
    $region5: #{tpu_custom_call.1} parent=1 // loop_body
      %s21 = ssub.s32 %s16, 1
      %s22 = ssub.s32 %s16, 2
      %s23 = sadd.s32 %s16, 1
      %s25 = sadd.s32 %s24, 1
      %p28 = scmp.eq.s32.totalorder %s16, 1
      %p29 = scmp.ne.s32.totalorder %s24, %s26
      %p30 = scmp.eq.s32.totalorder %s16, 0
      %p31 = por %p29, %p30
      %p32 = scmp.ne.s32.totalorder %s24, %s26
      %p33 = scmp.eq.s32.totalorder %s21, 1
      %p34 = por %p32, %p33
      %p35 = scmp.ne.s32.totalorder %s26, %s27
      %p36 = scmp.eq.s32.totalorder %s21, 0
      %p37 = por %p35, %p36
      %p38 = scmp.ne.s32.totalorder %s26, %s27
      %p39 = scmp.eq.s32.totalorder %s22, 1
      %p40 = por %p38, %p39
      %p42 = scmp.ne.s32.totalorder %s27, %s41
      %p43 = scmp.eq.s32.totalorder %s22, 0
      %p44 = por %p42, %p43
      %s45 = ssub.s32 %s16, %s23
      %p46 = scmp.eq.s32.totalorder %s45, 0
      %s48 = sadd.s32 %s47, 1
      %s49 = scalar_select %p46, %s47, %s48
      %p52 = pneg %p46
      %p53 = scmp.eq.s32.totalorder %s16, 1
      %p54 = por %p52, %p53
      %p55 = scmp.ne.s32.totalorder %s47, %s50
      %p56 = scmp.eq.s32.totalorder %s16, 0
      %p57 = por %p55, %p56
      %p58 = scmp.ne.s32.totalorder %s47, %s50
      %p59 = scmp.eq.s32.totalorder %s21, 1
      %p60 = por %p58, %p59
      %p61 = scmp.ne.s32.totalorder %s50, %s51
      %p62 = scmp.eq.s32.totalorder %s21, 0
      %p63 = por %p61, %p62
      %p64 = scmp.ne.s32.totalorder %s50, %s51
      %p65 = scmp.eq.s32.totalorder %s22, 1
      %p66 = por %p64, %p65
      %p68 = scmp.ne.s32.totalorder %s51, %s67
      %p69 = scmp.eq.s32.totalorder %s22, 0
      %p70 = por %p68, %p69
      %p71 = scmp.le.s32.totalorder 1, %s16
      %p72 = scmp.lt.s32.totalorder %s16, 3
      %p73 = pnand %p71, %p72
      %p74 = pneg %p73
      // Predicated region
      $region9: #{tpu_custom_call.1} parent=5 // pred_check
        _
      $region10: #{tpu_custom_call.1} parent=5 // pred_check_branch
        %76 = sbr.rel (%p73) target = $region12
      $region11: #{tpu_custom_call.1} parent=5 // pred_region
        %s77 = ssub.s32 %s16, 1
        // Predicated region
        $region13: #{tpu_custom_call.1} parent=11 // pred_check
          %p78 = pneg %p37
        $region14: #{tpu_custom_call.1} parent=11 // pred_check_branch
          %80 = sbr.rel (%p78) target = $region16
        $region15: #{tpu_custom_call.1} parent=11 // pred_region
          %s82 = ssub.s32 128, 128
          %83 = vsyncadd [#allocation5], %s82
          %s85 = sshll.u32 [#allocation4], 4
          %s86 = int_to_ptr.vmem [resolvable:$true] %s85
          %88 = dma.hbm_to_vmem [thread:$0]  %s1, 128, %s86, [#allocation5]
        $region16: #{tpu_custom_call.1} parent=11 // pred_fallthru
          _
      $region12: #{tpu_custom_call.1} parent=5 // pred_fallthru
        _
      %p89 = scmp.lt.s32.totalorder %s16, 2
      // Predicated region
      $region17: #{tpu_custom_call.1} parent=5 // pred_check
        %p90 = pneg %p89
      $region18: #{tpu_custom_call.1} parent=5 // pred_check_branch
        %92 = sbr.rel (%p90) target = $region20
      $region19: #{tpu_custom_call.1} parent=5 // pred_region
        _
      $region20: #{tpu_custom_call.1} parent=5 // pred_fallthru
        _
      %p93 = scmp.le.s32.totalorder 1, %s16
      %p94 = scmp.lt.s32.totalorder %s16, 3
      %p95 = pnand %p93, %p94
      %p96 = pneg %p95
      // Predicated region
      $region21: #{tpu_custom_call.1} parent=5 // pred_check
        _
      $region22: #{tpu_custom_call.1} parent=5 // pred_check_branch
        %98 = sbr.rel (%p95) target = $region24
      $region23: #{tpu_custom_call.1} parent=5 // pred_region
        %s99 = ssub.s32 %s16, 1
        // Predicated region
        $region25: #{tpu_custom_call.1} parent=23 // pred_check
          %p100 = pneg %p37
        $region26: #{tpu_custom_call.1} parent=23 // pred_check_branch
          %102 = sbr.rel (%p100) target = $region28
        $region27: #{tpu_custom_call.1} parent=23 // pred_region
          %103 = dma.done [#allocation5], 128
        $region28: #{tpu_custom_call.1} parent=23 // pred_fallthru
          _
        %p104 = pneg %p37
        %p105 = pneg %p34
        %p106 = pneg %p63
        %p107 = pneg %p60
        %s108 = sand.u32 %s50, 1
        %s109 = scalar_lea.sflag [#allocation6], %s108
        %s110 = sand.u32 %s50, 1
        %s111 = smul.addr %s110, 8
        %s112 = scalar_lea.vmem [#allocation7], %s111
        %s113 = smul.u32 %s21, 8
        %p114 = scmp.lt.s32.totalorder %s113, 15
        %s115 = scalar_select %p114, %s113, 15
        %s116 = sld [smem:[#allocation3 + %s115]]
        %s117 = scalar_lea.vmem [#allocation4], %s116
        %v118 = vld [vmem:[%s117] sm:$0x1]
        %119 = vst [vmem:[%s112] sm:$0x1] %v118
        %s120 = sadd.s32 %s113, 1
        %p121 = scmp.lt.s32.totalorder %s120, 15
        %s122 = scalar_select %p121, %s120, 15
        %s123 = sld [smem:[#allocation3 + %s122]]
        %s124 = scalar_lea.vmem [#allocation4], %s123
        %v125 = vld [vmem:[%s124] sm:$0x1]
        %126 = vst [vmem:[%s112 + $0x1] sm:$0x1] %v125
        %s127 = sadd.s32 %s113, 2
        %p128 = scmp.lt.s32.totalorder %s127, 15
        %s129 = scalar_select %p128, %s127, 15
        %s130 = sld [smem:[#allocation3 + %s129]]
        %s131 = scalar_lea.vmem [#allocation4], %s130
        %v132 = vld [vmem:[%s131] sm:$0x1]
        %133 = vst [vmem:[%s112 + $0x2] sm:$0x1] %v132
        %s134 = sadd.s32 %s113, 3
        %p135 = scmp.lt.s32.totalorder %s134, 15
        %s136 = scalar_select %p135, %s134, 15
        %s137 = sld [smem:[#allocation3 + %s136]]
        %s138 = scalar_lea.vmem [#allocation4], %s137
        %v139 = vld [vmem:[%s138] sm:$0x1]
        %140 = vst [vmem:[%s112 + $0x3] sm:$0x1] %v139
        %s141 = sadd.s32 %s113, 4
        %p142 = scmp.lt.s32.totalorder %s141, 15
        %s143 = scalar_select %p142, %s141, 15
        %s144 = sld [smem:[#allocation3 + %s143]]
        %s145 = scalar_lea.vmem [#allocation4], %s144
        %v146 = vld [vmem:[%s145] sm:$0x1]
        %147 = vst [vmem:[%s112 + $0x4] sm:$0x1] %v146
        %s148 = sadd.s32 %s113, 5
        %p149 = scmp.lt.s32.totalorder %s148, 15
        %s150 = scalar_select %p149, %s148, 15
        %s151 = sld [smem:[#allocation3 + %s150]]
        %s152 = scalar_lea.vmem [#allocation4], %s151
        %v153 = vld [vmem:[%s152] sm:$0x1]
        %154 = vst [vmem:[%s112 + $0x5] sm:$0x1] %v153
        %s155 = sadd.s32 %s113, 6
        %p156 = scmp.lt.s32.totalorder %s155, 15
        %s157 = scalar_select %p156, %s155, 15
        %s158 = sld [smem:[#allocation3 + %s157]]
        %s159 = scalar_lea.vmem [#allocation4], %s158
        %v160 = vld [vmem:[%s159] sm:$0x1]
        %161 = vst [vmem:[%s112 + $0x6] sm:$0x1] %v160
        %s162 = sadd.s32 %s113, 7
        %p163 = scmp.lt.s32.totalorder %s162, 15
        %s164 = scalar_select %p163, %s162, 15
        %s165 = sld [smem:[#allocation3 + %s164]]
        %s166 = scalar_lea.vmem [#allocation4], %s165
        %v167 = vld [vmem:[%s166] sm:$0x1]
        %168 = vst [vmem:[%s112 + $0x7] sm:$0x1] %v167
        %s169 = sand.u32 %s50, 1
        %s170 = scalar_lea.sflag [#allocation6], %s169
        %s171 = sand.u32 %s50, 1
        %s172 = smul.addr %s171, 8
        %s173 = scalar_lea.vmem [#allocation7], %s172
        // Predicated region
        $region29: #{tpu_custom_call.1} parent=23 // pred_check
          %p174 = pneg %p60
        $region30: #{tpu_custom_call.1} parent=23 // pred_check_branch
          %176 = sbr.rel (%p174) target = $region32
        $region31: #{tpu_custom_call.1} parent=23 // pred_region
          %s178 = ssub.s32 128, 128
          %179 = vsyncadd %s170, %s178
          %s180 = smul.addr %s21, 128
          %s181 = scalar_lea.hbm %s2, %s180
          %s183 = sshll.u32 %s173, 4
          %s184 = int_to_ptr.vmem [resolvable:$true] %s183
          %186 = dma.vmem_to_hbm [thread:$0]  %s184, 128, %s181, %s170
        $region32: #{tpu_custom_call.1} parent=23 // pred_fallthru
          _
      $region24: #{tpu_custom_call.1} parent=5 // pred_fallthru
        _
      %p187 = scmp.le.s32.totalorder 2, %s16
      // Predicated region
      $region33: #{tpu_custom_call.1} parent=5 // pred_check
        %p188 = pneg %p187
      $region34: #{tpu_custom_call.1} parent=5 // pred_check_branch
        %190 = sbr.rel (%p188) target = $region36
      $region35: #{tpu_custom_call.1} parent=5 // pred_region
        %s191 = ssub.s32 %s16, 2
        // Predicated region
        $region37: #{tpu_custom_call.1} parent=35 // pred_check
          %p192 = pneg %p66
        $region38: #{tpu_custom_call.1} parent=35 // pred_check_branch
          %194 = sbr.rel (%p192) target = $region40
        $region39: #{tpu_custom_call.1} parent=35 // pred_region
          %s195 = sand.u32 %s51, 1
          %s196 = scalar_lea.sflag [#allocation6], %s195
          %s197 = sand.u32 %s51, 1
          %s198 = smul.addr %s197, 8
          %s199 = scalar_lea.vmem [#allocation7], %s198
          %200 = dma.done %s196, 128
        $region40: #{tpu_custom_call.1} parent=35 // pred_fallthru
          _
      $region36: #{tpu_custom_call.1} parent=5 // pred_fallthru
        _
    $region6: #{tpu_custom_call.1} parent=1 // loop_footer
      %s20 = sadd.s32 1, %s16
    $region7: #{tpu_custom_call.1} parent=1 // loop_footer_branch
      %15 = sbr.rel target = $region3
    $region8: #{tpu_custom_call.1} parent=1 // loop_exit
      _
    %201 = vsyncpa [#allocation5], 1
    %s202 = scalar_lea.sflag [#allocation5], 1
    %203 = vsyncpa %s202, 1
    %204 = vsyncpa [#allocation6], 1
    %s205 = scalar_lea.sflag [#allocation6], 1
    %206 = vsyncpa %s205, 1

</llo_original>
